<compile_context>
chip_gen: v6e
topology: v6e:2x2x1
jax: 0.10.0
libtpu: 0.0.40
codegen_flags: <defaults>
</compile_context>

<pallas_src>
import functools
import math

import jax
import jax.numpy as jnp
from jax.experimental import pallas as pl
from jax.experimental.pallas import tpu as pltpu


def _softplus_transformed_kernel(x_ref, o_ref, *, beta, bias, threshold):
    x = x_ref[...].astype(jnp.float32)
    bx = x * beta
    # Numerically stable softplus: log1p(exp(bx)) == max(bx, 0) + log1p(exp(-|bx|))
    sp = (jnp.maximum(bx, 0.0) + jnp.log1p(jnp.exp(-jnp.abs(bx)))) * (1.0 / beta)
    out = jnp.where(bx > threshold, x, sp) + bias
    o_ref[...] = out.astype(o_ref.dtype)


def softplus_transformed(x, intercept_ordinate=0.6931, bias=0.0, threshold=20):
    assert intercept_ordinate > bias, (
        "The ordinate intercept is not allowed to be smaller than or equal to the bias!"
    )
    beta = math.log(2.0) / (float(intercept_ordinate) - float(bias))

    orig_shape = x.shape
    orig_dtype = x.dtype
    n = x.size

    # Lane-dense slab geometry.
    LANE_W = 1024          # last dim -> lanes; large multiple of 128 (unmasked vst)
    TILE_ROWS = 512        # (512, 1024) f32 tile = 2 MiB; 4x tile (double-buffered
                           # in + out) = 8 MiB, fits default scoped VMEM on all gens.

    rows = pl.cdiv(n, LANE_W)
    tile_rows = TILE_ROWS if rows > TILE_ROWS else rows
    rows_padded = pl.cdiv(rows, tile_rows) * tile_rows
    n_padded = rows_padded * LANE_W

    flat = x.reshape(-1)
    if n_padded != n:
        flat = jnp.pad(flat, (0, n_padded - n))
    x2d = flat.reshape(rows_padded, LANE_W)

    grid = (rows_padded // tile_rows,)

    kernel = functools.partial(
        _softplus_transformed_kernel,
        beta=beta,
        bias=float(bias),
        threshold=float(threshold),
    )

    out2d = pl.pallas_call(
        kernel,
        out_shape=jax.ShapeDtypeStruct((rows_padded, LANE_W), orig_dtype),
        grid=grid,
        in_specs=[pl.BlockSpec((tile_rows, LANE_W), lambda i: (i, 0))],
        out_specs=pl.BlockSpec((tile_rows, LANE_W), lambda i: (i, 0)),
        compiler_params=pltpu.CompilerParams(
            dimension_semantics=("parallel",),
        ),
    )(x2d)

    out_flat = out2d.reshape(-1)
    if n_padded != n:
        out_flat = out_flat[:n]
    return out_flat.reshape(orig_shape)


def _reference(x, intercept_ordinate=0.6931, bias=0.0, threshold=20):
    beta = jnp.log(2.0) / (intercept_ordinate - bias)
    bx = beta * x
    sp = jnp.where(bx > threshold, x, jnp.log1p(jnp.exp(jnp.minimum(bx, 30.0))) / beta)
    return sp + bias


if __name__ == "__main__":
    key = jax.random.PRNGKey(0)
    # NCHW input, small shapes: batch=2, channels=4, spatial=16x16
    x = jax.random.normal(key, (2, 4, 16, 16), dtype=jnp.float32) * 5.0

    out = softplus_transformed(x)
    out = jax.block_until_ready(out)

    ref = _reference(x)
    assert out.shape == x.shape and out.dtype == x.dtype
    assert jnp.allclose(out, ref, atol=1e-5, rtol=1e-5), (
        float(jnp.max(jnp.abs(out - ref)))
    )
    print("KERNEL_OK")
</pallas_src>

<mosaic_0001>
module attributes {stable_mosaic.version = 11 : i64} {
  func.func @_softplus_transformed_kernel(%arg0: i32, %arg1: memref<2x1024xf32, #tpu.memory_space<vmem>>, %arg2: memref<2x1024xf32, #tpu.memory_space<vmem>>) attributes {dimension_semantics = [#tpu.dimension_semantics<parallel>], iteration_bounds = array<i64: 1>, scalar_prefetch = 0 : i64, scratch_operands = 0 : i64, tpu.core_type = #tpu.core_type<tc>, window_params = [{transform_indices = @transform_0, window_bounds = array<i64: 2, 1024>}, {transform_indices = @transform_1, window_bounds = array<i64: 2, 1024>}]} {
    %c0 = arith.constant 0 : index
    %c0_0 = arith.constant 0 : index
    %0 = vector.load %arg1[%c0, %c0_0] : memref<2x1024xf32, #tpu.memory_space<vmem>>, vector<2x1024xf32>
    %cst = arith.constant 1.00006807 : f32
    %1 = vector.broadcast %cst : f32 to vector<2x1024xf32>
    %2 = arith.mulf %0, %1 : vector<2x1024xf32>
    %cst_1 = arith.constant 0.000000e+00 : f32
    %3 = vector.broadcast %cst_1 : f32 to vector<2x1024xf32>
    %4 = arith.maximumf %2, %3 : vector<2x1024xf32>
    %5 = math.absf %2 : vector<2x1024xf32>
    %cst_2 = arith.constant 0.000000e+00 : f32
    %6 = vector.broadcast %cst_2 : f32 to vector<2x1024xf32>
    %7 = arith.subf %6, %5 : vector<2x1024xf32>
    %8 = math.exp %7 : vector<2x1024xf32>
    %9 = math.log1p %8 : vector<2x1024xf32>
    %10 = arith.addf %4, %9 : vector<2x1024xf32>
    %cst_3 = arith.constant 0.999931931 : f32
    %11 = vector.broadcast %cst_3 : f32 to vector<2x1024xf32>
    %12 = arith.mulf %10, %11 : vector<2x1024xf32>
    %cst_4 = arith.constant 2.000000e+01 : f32
    %13 = vector.broadcast %cst_4 : f32 to vector<2x1024xf32>
    %14 = arith.cmpf ogt, %2, %13 : vector<2x1024xf32>
    %15 = arith.select %14, %0, %12 : vector<2x1024xi1>, vector<2x1024xf32>
    %cst_5 = arith.constant 0.000000e+00 : f32
    %16 = vector.broadcast %cst_5 : f32 to vector<2x1024xf32>
    %17 = arith.addf %15, %16 : vector<2x1024xf32>
    %c0_6 = arith.constant 0 : index
    %c0_7 = arith.constant 0 : index
    %18 = vector.load %arg2[%c0_6, %c0_7] : memref<2x1024xf32, #tpu.memory_space<vmem>>, vector<2x1024xf32>
    tpu.vector_store %arg2[%c0_6, %c0_7], %17 {strides = array<i32>} : memref<2x1024xf32, #tpu.memory_space<vmem>>, vector<2x1024xf32>,
    return
  }
  func.func @transform_0(%arg0: i32) -> (i32, i32) {
    %c0_i32 = arith.constant 0 : i32
    %c0_i32_0 = arith.constant 0 : i32
    return %arg0, %c0_i32 : i32, i32
  }
  func.func @transform_1(%arg0: i32) -> (i32, i32) {
    %c0_i32 = arith.constant 0 : i32
    %c0_i32_0 = arith.constant 0 : i32
    return %arg0, %c0_i32 : i32, i32
  }
}

</mosaic_0001>

<llo_original>
// kernel: tpu_custom_call.1
$region0: #{tpu_custom_call.1}
  #allocation0 [shape = 'u32[]', space=smem, size = 0x4, offset = 0x4, fixed_abs, tag = 'smem constant byte address 0x4 - core index']
  #allocation1 [shape = 'u32[144,128]{1,0:T(1,128)}', space=vmem, size = 0x12000, scoped, tag = 'internal scratch']
  %s0 = inlined_call_operand.hbm [shape: f32[2,1024], index: 0, kind: input, shape index: {}]
  %s1 = inlined_call_operand.hbm [shape: f32[2,1024], index: 1, kind: output, shape index: {}]
  %s2 = sld [smem:[#allocation0]]
  $region18: #{tpu_custom_call.1} parent=0
    _
  %s4 = ssub.s32 1, %s2
  %s5 = scalar_select 0, %s4, %s2
  $region1: #{tpu_custom_call.1} parent=0
    #allocation2 [shape = 'u8[8192]{0}', space=vmem, size = 0x2000, scoped, tag = 'input window, operand 0, single buffered']
    #allocation3 [shape = 's32[1]{0}', space=sflag, size = 0x4, scoped, tag = 'scoped memory for tpu_custom_call.1']
    #allocation4 [shape = 's32[1]{0}', space=sflag, size = 0x4, scoped, tag = 'scoped memory for tpu_custom_call.1']
    #allocation5 [shape = 'u8[8192]{0}', space=vmem, size = 0x2000, scoped, tag = 'output window, operand 0, single buffered']
    %6 = vsyncpa [#allocation3], 0
    %7 = vsyncpa [#allocation4], 0
    // Predicated region
    $region2: #{tpu_custom_call.1} parent=1 // pred_check
      _
    $region3: #{tpu_custom_call.1} parent=1 // pred_check_branch
      %9 = sbr.rel (0) target = $region5
    $region4: #{tpu_custom_call.1} parent=1 // pred_region
      %s11 = ssub.s32 256, 256
      %12 = vsyncadd [#allocation3], %s11
      %s14 = sshll.u32 [#allocation2], 4
      %s15 = int_to_ptr.vmem [resolvable:$true] %s14
      %17 = dma.hbm_to_vmem [thread:$0]  %s0, 256, %s15, [#allocation3]
    $region5: #{tpu_custom_call.1} parent=1 // pred_fallthru
      _
    // Predicated region
    $region6: #{tpu_custom_call.1} parent=1 // pred_check
      _
    $region7: #{tpu_custom_call.1} parent=1 // pred_check_branch
      %19 = sbr.rel (0) target = $region9
    $region8: #{tpu_custom_call.1} parent=1 // pred_region
      %20 = dma.done [#allocation3], 256
    $region9: #{tpu_custom_call.1} parent=1 // pred_fallthru
      _
    %v21 = vld [vmem:[#allocation2] sm:$0xff]
    %v22 = vld [vmem:[#allocation2 + $0x8] sm:$0xff]
    %v23 = vmul.f32 %v21, 1.0000681
    %v24 = vmul.f32 %v22, 1.0000681
    %v25 = vmax.f32 %v23, 0.0
    %v26 = vmax.f32 %v24, 0.0
    %v27 = vand.u32 2147483647, %v23
    %v28 = vand.u32 2147483647, %v24
    %v29 = vsub.f32 0.0, %v27
    %v30 = vsub.f32 0.0, %v28
    %v31 = vmul.f32 %v29, 1.442695
    %v32 = vpow.pop %v31
    %v33 = vmul.f32 %v30, 1.442695
    %v34 = vpow.pop %v33
    %v35 = vadd.f32 %v32, 1.0
    %v36 = vlog2.pop %v35
    %v37 = vmul.f32 %v36, 0.6931472
    %v38 = vmul.f32 -0.5, %v32
    %v39 = vadd.f32 %v38, 1.0
    %v40 = vmul.f32 %v39, %v32
    %v41 = vand.u32 2147483647, %v32
    %vm42 = vcmp.lt.f32.partialorder %v41, 0.0004427343
    %v43 = vsel %vm42, %v40, %v37
    %v44 = vadd.f32 %v34, 1.0
    %v45 = vlog2.pop %v44
    %v46 = vmul.f32 %v45, 0.6931472
    %v47 = vmul.f32 -0.5, %v34
    %v48 = vadd.f32 %v47, 1.0
    %v49 = vmul.f32 %v48, %v34
    %v50 = vand.u32 2147483647, %v34
    %vm51 = vcmp.lt.f32.partialorder %v50, 0.0004427343
    %v52 = vsel %vm51, %v49, %v46
    %v53 = vadd.f32 %v25, %v43
    %v54 = vadd.f32 %v26, %v52
    %v55 = vmul.f32 %v53, 0.99993193
    %v56 = vmul.f32 %v54, 0.99993193
    %vm57 = vcmp.gt.f32.partialorder %v23, 20.0
    %vm58 = vcmp.gt.f32.partialorder %v24, 20.0
    %v59 = vsel %vm57, %v21, %v55
    %v60 = vsel %vm58, %v22, %v56
    %v61 = vadd.f32 %v59, 0.0
    %v62 = vadd.f32 %v60, 0.0
    %63 = vst [vmem:[#allocation5] sm:$0xff] %v61
    %64 = vst [vmem:[#allocation5 + $0x8] sm:$0xff] %v62
    // Predicated region
    $region10: #{tpu_custom_call.1} parent=1 // pred_check
      _
    $region11: #{tpu_custom_call.1} parent=1 // pred_check_branch
      %66 = sbr.rel (0) target = $region13
    $region12: #{tpu_custom_call.1} parent=1 // pred_region
      %s68 = ssub.s32 256, 256
      %69 = vsyncadd [#allocation4], %s68
      %s71 = sshll.u32 [#allocation5], 4
      %s72 = int_to_ptr.vmem [resolvable:$true] %s71
      %74 = dma.vmem_to_hbm [thread:$0]  %s72, 256, %s1, [#allocation4]
    $region13: #{tpu_custom_call.1} parent=1 // pred_fallthru
      _
    // Predicated region
    $region14: #{tpu_custom_call.1} parent=1 // pred_check
      _
    $region15: #{tpu_custom_call.1} parent=1 // pred_check_branch
      %76 = sbr.rel (0) target = $region17
    $region16: #{tpu_custom_call.1} parent=1 // pred_region
      %77 = dma.done [#allocation4], 256
    $region17: #{tpu_custom_call.1} parent=1 // pred_fallthru
      _
    %78 = vsyncpa [#allocation3], 1
    %79 = vsyncpa [#allocation4], 1

</llo_original>
